<compile_context>
chip_gen: v5e
topology: v5e:2x2
jax: 0.10.0
libtpu: 0.0.40
codegen_flags: <defaults>
</compile_context>

<pallas_src>
import functools
import time

import jax
import jax.numpy as jnp
from jax import lax
from jax.experimental import pallas as pl
from jax.experimental.pallas import tpu as pltpu


def _round_up(x, m):
    return ((x + m - 1) // m) * m


# ------------------------------------------------------------------
# 1) Token-importance reduction kernel (no wrapper-side stack)
# ------------------------------------------------------------------
def _make_importance_kernel(n_arrays, lb, tqw, q_start):
    def kernel(*refs):
        attn_refs = refs[:n_arrays]   # LH blocks, each (B, tqw, tS)
        out_ref = refs[n_arrays]      # (B, tS) f32 accumulator (resident)
        q = pl.program_id(1)

        @pl.when(q == 0)
        def _():
            out_ref[...] = jnp.zeros_like(out_ref)

        # Mask query rows that precede the lookback window (only the first
        # window block can contain such rows).
        row0 = (q_start + q) * tqw
        row = lax.broadcasted_iota(jnp.int32, (tqw, 1), 0) + row0
        maskf = (row >= lb).astype(jnp.float32)                 # (tqw, 1)

        acc = jnp.zeros(out_ref.shape, jnp.float32)
        for r in attn_refs:
            x = r[...].astype(jnp.float32)                      # (B, tqw, tS)
            acc = acc + jnp.sum(x * maskf[None, :, :], axis=1)
        out_ref[...] += acc

    return kernel


def _pick_s_tile(S):
    for t in (512, 256, 128):
        if S % t == 0:
            return t
    return S  # small S: full extent (allowed since it equals the array dim)


def _pick_q_tile(S, W, B, tS, n_arrays, itemsize):
    # Largest multiple-of-8 divisor of S not (much) larger than the lookback
    # window, subject to a conservative per-step VMEM budget for the
    # double-buffered input blocks of all LH attention arrays.
    budget = 12 * 1024 * 1024
    cap = max(8, min(256, _round_up(W, 8)))
    cands = [t for t in range(8, min(S, cap) + 1, 8) if S % t == 0]
    if not cands:
        return S
    for t in reversed(cands):
        if n_arrays * B * t * tS * itemsize * 2 <= budget:
            return t
    # TODO(synk): for very large num_layers*num_heads chunk the (layer, head)
    # reduction over several pallas_calls instead of shrinking tiles further.
    return cands[0]


def compute_importance_scores(attn_list, seq_len, lookback_window):
    """Sum of attention received inside the lookback query window.

    attn_list: list of (B, S, S) arrays (one per present (layer, head))."""
    n_arrays = len(attn_list)
    first = attn_list[0]
    B, S, _ = first.shape
    lb = max(0, seq_len - lookback_window)
    W = S - lb
    tS = _pick_s_tile(S)
    tqw = _pick_q_tile(S, W, B, tS, n_arrays, first.dtype.itemsize)
    q_start = lb // tqw
    nqb = (S - 1) // tqw - q_start + 1   # query blocks intersecting the window

    in_spec = pl.BlockSpec((B, tqw, tS), lambda s, q: (0, q_start + q, s))
    return pl.pallas_call(
        _make_importance_kernel(n_arrays, lb, tqw, q_start),
        out_shape=jax.ShapeDtypeStruct((B, S), jnp.float32),
        grid=(S // tS, nqb),
        in_specs=[in_spec] * n_arrays,
        out_specs=pl.BlockSpec((B, tS), lambda s, q: (0, s)),
        compiler_params=pltpu.CompilerParams(
            dimension_semantics=("parallel", "arbitrary")),
    )(*attn_list)


# ------------------------------------------------------------------
# 2) Fused gather kernel: all layers' K and V in one launch,
#    HBM -> HBM row DMAs (no VMEM staging), token-outer / array-inner.
# ------------------------------------------------------------------
def _make_gather_kernel(n_arrays, T, M):
    def kernel(idx_ref, *refs):
        in_refs = refs[:n_arrays]                 # HBM (B, S, HD) refs
        out_refs = refs[n_arrays:2 * n_arrays]    # HBM (B, M, HD) refs
        sem = refs[2 * n_arrays]                  # per-array DMA semaphores
        b = pl.program_id(0)
        c = pl.program_id(1)
        base = c * T

        # Token-outer / array-inner, fully unrolled: each keep-index is read
        # from SMEM exactly once and reused for all n_arrays row DMAs, letting
        # scalar loads and DMA-descriptor pushes co-issue.
        for t in range(T):
            tok = idx_ref[b * M + base + t]
            dst = base + t
            for a in range(n_arrays):
                pltpu.make_async_copy(
                    in_refs[a].at[b, tok], out_refs[a].at[b, dst],
                    sem.at[a]).start()

        # Single wait per array: the covering (T, HD) descriptor's byte count
        # equals the sum of the T row copies issued above on the same sem.
        for a in range(n_arrays):
            pltpu.make_async_copy(
                in_refs[a].at[b, pl.ds(0, T)],
                out_refs[a].at[b, pl.ds(base, T)],
                sem.at[a]).wait()

    return kernel


def _pick_token_chunk(M, n_arrays):
    # The chunk only bounds unrolled code size / in-flight DMAs per grid step;
    # outputs are written HBM->HBM so there is no VMEM budget to respect.
    cap = max(1, min(64, 512 // max(1, n_arrays)))
    t = 1
    for cand in range(1, cap + 1):
        if M % cand == 0:
            t = cand
    return t


def gather_kv_all_layers(key_cache, value_cache, keep_indices):
    """Gather kept tokens for every layer's K and V in a single pallas_call."""
    layers = list(key_cache.keys())
    first = key_cache[layers[0]]
    B, S, H, D = first.shape
    HD = H * D
    M = keep_indices.shape[1]

    flat_inputs = []
    for l in layers:
        flat_inputs.append(key_cache[l].reshape(B, S, HD))   # free reshape
        flat_inputs.append(value_cache[l].reshape(B, S, HD))
    n_arrays = len(flat_inputs)
    T = _pick_token_chunk(M, n_arrays)

    hbm = pl.BlockSpec(memory_space=pl.ANY)
    outs = pl.pallas_call(
        _make_gather_kernel(n_arrays, T, M),
        out_shape=tuple(jax.ShapeDtypeStruct((B, M, HD), x.dtype)
                        for x in flat_inputs),
        grid_spec=pltpu.PrefetchScalarGridSpec(
            num_scalar_prefetch=1,
            grid=(B, M // T),
            in_specs=[hbm] * n_arrays,
            out_specs=tuple(hbm for _ in range(n_arrays)),
            scratch_shapes=[pltpu.SemaphoreType.DMA((n_arrays,))],
        ),
        compiler_params=pltpu.CompilerParams(
            dimension_semantics=("parallel", "arbitrary")),
    )(keep_indices.reshape(-1).astype(jnp.int32), *flat_inputs)

    ck, cv = {}, {}
    for i, l in enumerate(layers):
        ck[l] = outs[2 * i].reshape(B, M, H, D)
        cv[l] = outs[2 * i + 1].reshape(B, M, H, D)
    return ck, cv


# ------------------------------------------------------------------
# 3) Online k-means single update step, tiled over N, dual-core friendly
# ------------------------------------------------------------------
def _kmeans_kernel(x_ref, c_ref, c2_ref, sums_ref, cnt_out_ref,
                   acc_ref, cnt_ref, *, n_real, tn, n_inner, dp, kp):
    p = pl.program_id(0)
    i = pl.program_id(1)

    @pl.when(i == 0)
    def _():
        acc_ref[...] = jnp.zeros_like(acc_ref)
        cnt_ref[...] = jnp.zeros_like(cnt_ref)

    Xb = x_ref[...].astype(jnp.bfloat16)        # (tn, 2*Dp): [keys | values]
    Kb = c_ref[:, :dp].astype(jnp.bfloat16)     # (Kp, Dp) key centroids
    # Squared-distance argmin; the per-row |x|^2 term is dropped (argmin
    # invariant).  c2 is precomputed in the wrapper (hoisted out of the tile
    # loop) with a huge value at padded clusters so they never win.
    xc = jnp.einsum("nd,kd->nk", Xb[:, :dp], Kb,
                    preferred_element_type=jnp.float32)       # (tn, Kp)
    d2 = c2_ref[...] - 2.0 * xc

    col = lax.broadcasted_iota(jnp.int32, d2.shape, 1)
    min_d = jnp.min(d2, axis=1, keepdims=True)
    first_idx = jnp.min(jnp.where(d2 <= min_d, col, kp), axis=1, keepdims=True)
    onehot = (col == first_idx).astype(jnp.float32)           # (tn, Kp)

    # Rows beyond the true N (tile padding) contribute nothing.
    row = lax.broadcasted_iota(jnp.int32, d2.shape, 0) + (p * n_inner + i) * tn
    onehot = jnp.where(row < n_real, onehot, 0.0)

    # One fused accumulation matmul over the concatenated [keys | values]
    # features (full 256-wide MXU on v6e/v7x); counts via a cheap sublane
    # reduction instead of a degenerate 1-column matmul.
    acc_ref[...] += jnp.einsum("nk,nd->kd", onehot.astype(jnp.bfloat16), Xb,
                               preferred_element_type=jnp.float32)
    cnt_ref[...] += jnp.sum(onehot, axis=0, keepdims=True)    # (1, Kp)

    @pl.when(i == n_inner - 1)
    def _():
        sums_ref[0] = acc_ref[...]
        cnt_out_ref[0] = cnt_ref[...]


def kmeans_step(keys_flat, values_flat, key_centroids, value_centroids, lr):
    N, D = keys_flat.shape
    K = key_centroids.shape[0]
    Dp = _round_up(D, 128)
    Kp = _round_up(K, 128)
    tn = min(2048, _round_up(N, 8))
    n_tiles = -(-N // tn)
    P = 2 if n_tiles >= 2 else 1            # use both v7x TensorCores
    n_inner = -(-n_tiles // P)
    Np = P * n_inner * tn

    def pad2(x, rows, cols):
        return jnp.pad(x, ((0, rows - x.shape[0]), (0, cols - x.shape[1])))

    xk = pad2(keys_flat, Np, Dp)            # original dtype; cast inside kernel
    xv = pad2(values_flat, Np, Dp)
    xkv = jnp.concatenate([xk, xv], axis=1)                     # (Np, 2*Dp)
    kc = pad2(key_centroids.astype(jnp.float32), Kp, Dp)
    vc = pad2(value_centroids.astype(jnp.float32), Kp, Dp)
    kcvc = jnp.concatenate([kc, vc], axis=1)                    # (Kp, 2*Dp)
    # Hoisted centroid norms; padded clusters get a huge value so the argmin
    # never picks them (removes per-tile masking work).
    c2 = jnp.sum(kc * kc, axis=1)
    c2 = jnp.where(jnp.arange(Kp) < K, c2, 1e30)[None, :]       # (1, Kp)

    kernel = functools.partial(_kmeans_kernel, n_real=N, tn=tn,
                               n_inner=n_inner, dp=Dp, kp=Kp)
    sums_p, cnts_p = pl.pallas_call(
        kernel,
        out_shape=(
            jax.ShapeDtypeStruct((P, Kp, 2 * Dp), jnp.float32),
            jax.ShapeDtypeStruct((P, 1, Kp), jnp.float32),
        ),
        grid=(P, n_inner),
        in_specs=[
            pl.BlockSpec((tn, 2 * Dp), lambda p, i: (p * n_inner + i, 0)),
            pl.BlockSpec((Kp, 2 * Dp), lambda p, i: (0, 0)),  # resident
            pl.BlockSpec((1, Kp), lambda p, i: (0, 0)),       # resident
        ],
        out_specs=(
            pl.BlockSpec((1, Kp, 2 * Dp), lambda p, i: (p, 0, 0)),
            pl.BlockSpec((1, 1, Kp), lambda p, i: (p, 0, 0)),
        ),
        scratch_shapes=[
            pltpu.VMEM((Kp, 2 * Dp), jnp.float32),
            pltpu.VMEM((1, Kp), jnp.float32),
        ],
        compiler_params=pltpu.CompilerParams(
            dimension_semantics=("parallel", "arbitrary")),
    )(xkv, kcvc, c2)

    # Tiny finalize (mean + EMA) in plain JAX: combines per-core partials.
    sums = jnp.sum(sums_p, axis=0)                 # (Kp, 2*Dp)
    counts = jnp.sum(cnts_p, axis=0)[0]            # (Kp,)
    ksum = sums[:K, :D]
    vsum = sums[:K, Dp:Dp + D]
    c = counts[:K]
    safe = jnp.maximum(c, 1.0)[:, None]
    has = (c > 0.0)[:, None]
    kc0 = key_centroids.astype(jnp.float32)
    vc0 = value_centroids.astype(jnp.float32)
    kc_new = jnp.where(has, (1.0 - lr) * kc0 + lr * (ksum / safe), kc0)
    vc_new = jnp.where(has, (1.0 - lr) * vc0 + lr * (vsum / safe), vc0)
    return kc_new, vc_new, c


# ------------------------------------------------------------------
# Python wrapper mirroring KVCacheCompressor.forward
# ------------------------------------------------------------------
class KVCacheCompressorPallas:
    def __init__(self, num_layers, num_heads, head_dim, max_cache_size, num_clusters,
                 pruning_interval=512, lookback_window=256, kmeans_learning_rate=0.01,
                 init_seed=0):
        self.num_layers = num_layers
        self.num_heads = num_heads
        self.head_dim = head_dim
        self.max_cache_size = max_cache_size
        self.num_clusters = num_clusters
        self.pruning_interval = pruning_interval
        self.lookback_window = lookback_window
        self.kmeans_lr = kmeans_learning_rate
        self.init_seed = init_seed
        # online k-means state (mirrors OnlineKMeansClustering)
        self.kmeans_initialized = False
        self.key_centroids = None
        self.value_centroids = None
        self.cluster_counts = jnp.zeros((num_clusters,), jnp.float32)
        # compressor state
        self.token_positions = None
        self.current_seq_len = 0
        self.steps_since_last_pruning = 0
        self.stats = {"pruning_count": 0, "avg_pruning_time": 0,
                      "avg_tokens_removed": 0, "compression_ratio": 0}

    # ---- OnlineKMeansClustering.initialize ----
    def _kmeans_initialize(self, keys_flat, values_flat):
        if self.kmeans_initialized:
            return
        n = keys_flat.shape[0]
        if n < self.num_clusters:
            reps = (self.num_clusters + n - 1) // n
            keys_flat = jnp.tile(keys_flat, (reps, 1))
            values_flat = jnp.tile(values_flat, (reps, 1))
            n = keys_flat.shape[0]
        # TODO(synk): torch.randperm is nondeterministic; use a fixed-key permutation instead.
        idx = jax.random.permutation(jax.random.PRNGKey(self.init_seed), n)[: self.num_clusters]
        self.key_centroids = keys_flat[idx].astype(jnp.float32)
        self.value_centroids = values_flat[idx].astype(jnp.float32)
        self.cluster_counts = jnp.ones((self.num_clusters,), jnp.float32)
        self.kmeans_initialized = True

    # ---- OnlineKMeansClustering.cluster (assignment + sums in Pallas) ----
    def _kmeans_cluster(self, keys_flat, values_flat):
        self._kmeans_initialize(keys_flat, values_flat)
        kc, vc, counts = kmeans_step(keys_flat, values_flat,
                                     self.key_centroids, self.value_centroids,
                                     self.kmeans_lr)
        self.key_centroids, self.value_centroids = kc, vc
        self.cluster_counts = self.cluster_counts + counts
        return kc, vc

    def __call__(self, key_cache, value_cache, attention_matrices=None, do_pruning=False):
        first = next(iter(key_cache.values()))
        batch_size, seq_len = first.shape[0], first.shape[1]
        self.current_seq_len = seq_len
        self.steps_since_last_pruning += 1

        if self.token_positions is None:
            self.token_positions = jnp.tile(jnp.arange(seq_len)[None, :], (batch_size, 1))
        elif self.token_positions.shape[1] < seq_len:
            new_pos = jnp.tile(
                jnp.arange(self.token_positions.shape[1], seq_len)[None, :], (batch_size, 1))
            self.token_positions = jnp.concatenate([self.token_positions, new_pos], axis=1)

        should_prune = do_pruning or (
            self.steps_since_last_pruning >= self.pruning_interval
            and seq_len > self.max_cache_size)
        if not should_prune:
            return key_cache, value_cache, self.stats
        self.steps_since_last_pruning = 0
        # TODO(synk): on the first call this timing includes JAX trace/compile time.
        start_time = time.time()
        if attention_matrices is None:
            return key_cache, value_cache, self.stats

        # Pass the per-(layer, head) attention matrices directly (no HBM stack);
        # the lookback window is handled inside the Pallas kernel.
        attn_list = []
        for layer in range(self.num_layers):
            for head in range(self.num_heads):
                if (layer, head) in attention_matrices:
                    a = attention_matrices[(layer, head)]
                    if a.shape[1] != seq_len or a.shape[2] != seq_len:
                        a = a[:, :seq_len, :seq_len]
                    attn_list.append(a)

        importance_scores = compute_importance_scores(
            attn_list, seq_len, self.lookback_window)

        # top-B selection (sort has no clean Pallas equivalent -> plain JAX glue)
        sorted_indices = jnp.argsort(-importance_scores, axis=1)
        keep_indices = jnp.sort(sorted_indices[:, : self.max_cache_size], axis=1)
        self.token_positions = jnp.take_along_axis(self.token_positions, keep_indices, axis=1)

        # fused gather: every layer's K and V in one pallas_call (HBM -> HBM)
        ck_all, cv_all = gather_kv_all_layers(key_cache, value_cache, keep_indices)

        compressed_key_cache = {}
        compressed_value_cache = {}
        for layer in key_cache.keys():
            ck, cv = ck_all[layer], cv_all[layer]
            if self.num_clusters < self.max_cache_size:
                n = batch_size * self.max_cache_size * self.num_heads
                keys_flat = ck.reshape(n, self.head_dim)
                values_flat = cv.reshape(n, self.head_dim)
                kc, vc = self._kmeans_cluster(keys_flat, values_flat)
                compressed_key_cache[layer] = jnp.broadcast_to(
                    kc[None, :, None, :],
                    (batch_size, self.num_clusters, self.num_heads, self.head_dim))
                compressed_value_cache[layer] = jnp.broadcast_to(
                    vc[None, :, None, :],
                    (batch_size, self.num_clusters, self.num_heads, self.head_dim))
            else:
                compressed_key_cache[layer] = ck
                compressed_value_cache[layer] = cv

        elapsed = time.time() - start_time
        tokens_removed = seq_len - min(self.max_cache_size, seq_len)
        compression_ratio = seq_len / min(self.max_cache_size, seq_len)
        self.stats["pruning_count"] += 1
        pc = self.stats["pruning_count"]
        self.stats["avg_pruning_time"] = (self.stats["avg_pruning_time"] * (pc - 1) + elapsed) / pc
        self.stats["avg_tokens_removed"] = (
            self.stats["avg_tokens_removed"] * (pc - 1) + tokens_removed) / pc
        self.stats["compression_ratio"] = compression_ratio
        return compressed_key_cache, compressed_value_cache, self.stats


# ------------------------------------------------------------------
if __name__ == "__main__":
    B, S, L, H, D = 2, 16, 2, 4, 32
    max_cache_size, num_clusters, lookback = 8, 4, 8

    root = jax.random.PRNGKey(0)
    kk, kv, ka = jax.random.split(root, 3)

    key_cache, value_cache = {}, {}
    kkeys = jax.random.split(kk, L)
    vkeys = jax.random.split(kv, L)
    for l in range(L):
        key_cache[l] = jax.random.normal(kkeys[l], (B, S, H, D), jnp.float32)
        value_cache[l] = jax.random.normal(vkeys[l], (B, S, H, D), jnp.float32)

    attention_matrices = {}
    akeys = jax.random.split(ka, L * H)
    i = 0
    for l in range(L):
        for h in range(H):
            logits = jax.random.normal(akeys[i], (B, S, S), jnp.float32)
            attention_matrices[(l, h)] = jax.nn.softmax(logits, axis=-1)
            i += 1

    compressor = KVCacheCompressorPallas(
        num_layers=L, num_heads=H, head_dim=D,
        max_cache_size=max_cache_size, num_clusters=num_clusters,
        pruning_interval=512, lookback_window=lookback,
        kmeans_learning_rate=0.01)

    ck, cv, stats = compressor(key_cache, value_cache,
                               attention_matrices=attention_matrices,
                               do_pruning=True)
    for l in ck:
        jax.block_until_ready(ck[l])
        jax.block_until_ready(cv[l])
    print("KERNEL_OK")
</pallas_src>

<mosaic_0001>
module attributes {stable_mosaic.version = 11 : i64} {
  func.func @kernel(%arg0: i32, %arg1: i32, %arg2: memref<2x8x16xf32, #tpu.memory_space<vmem>>, %arg3: memref<2x8x16xf32, #tpu.memory_space<vmem>>, %arg4: memref<2x8x16xf32, #tpu.memory_space<vmem>>, %arg5: memref<2x8x16xf32, #tpu.memory_space<vmem>>, %arg6: memref<2x8x16xf32, #tpu.memory_space<vmem>>, %arg7: memref<2x8x16xf32, #tpu.memory_space<vmem>>, %arg8: memref<2x8x16xf32, #tpu.memory_space<vmem>>, %arg9: memref<2x8x16xf32, #tpu.memory_space<vmem>>, %arg10: memref<2x16xf32, #tpu.memory_space<vmem>>) attributes {dimension_semantics = [#tpu.dimension_semantics<parallel>, #tpu.dimension_semantics<arbitrary>], iteration_bounds = array<i64: 1, 1>, scalar_prefetch = 0 : i64, scratch_operands = 0 : i64, tpu.core_type = #tpu.core_type<tc>, window_params = [{transform_indices = @transform_0, window_bounds = array<i64: 2, 8, 16>}, {transform_indices = @transform_1, window_bounds = array<i64: 2, 8, 16>}, {transform_indices = @transform_2, window_bounds = array<i64: 2, 8, 16>}, {transform_indices = @transform_3, window_bounds = array<i64: 2, 8, 16>}, {transform_indices = @transform_4, window_bounds = array<i64: 2, 8, 16>}, {transform_indices = @transform_5, window_bounds = array<i64: 2, 8, 16>}, {transform_indices = @transform_6, window_bounds = array<i64: 2, 8, 16>}, {transform_indices = @transform_7, window_bounds = array<i64: 2, 8, 16>}, {transform_indices = @transform_8, window_bounds = array<i64: 2, 16>}]} {
    %c0_i32 = arith.constant 0 : i32
    %0 = arith.cmpi eq, %arg1, %c0_i32 : i32
    %1 = arith.extui %0 : i1 to i32
    %c0_i32_0 = arith.constant 0 : i32
    %2 = arith.cmpi ne, %1, %c0_i32_0 : i32
    scf.if %2 {
      %cst_37 = arith.constant 0.000000e+00 : f32
      %64 = vector.broadcast %cst_37 : f32 to vector<2x16xf32>
      %c0_38 = arith.constant 0 : index
      %c0_39 = arith.constant 0 : index
      %65 = vector.load %arg10[%c0_38, %c0_39] : memref<2x16xf32, #tpu.memory_space<vmem>>, vector<2x16xf32>
      tpu.vector_store %arg10[%c0_38, %c0_39], %64 {strides = array<i32>} : memref<2x16xf32, #tpu.memory_space<vmem>>, vector<2x16xf32>,
    } else {
    }
    %c1_i32 = arith.constant 1 : i32
    %3 = arith.addi %c1_i32, %arg1 : i32
    %c8_i32 = arith.constant 8 : i32
    %4 = arith.muli %3, %c8_i32 : i32
    %5 = tpu.iota {dimensions = array<i32: 0>} : vector<8x1xi32>
    %6 = vector.broadcast %4 : i32 to vector<8x1xi32>
    %7 = arith.addi %5, %6 : vector<8x1xi32>
    %c8_i32_1 = arith.constant 8 : i32
    %8 = vector.broadcast %c8_i32_1 : i32 to vector<8x1xi32>
    %9 = arith.cmpi sge, %7, %8 : vector<8x1xi32>
    %10 = arith.extui %9 : vector<8x1xi1> to vector<8x1xi32>
    %11 = arith.sitofp %10 : vector<8x1xi32> to vector<8x1xf32>
    %cst = arith.constant 0.000000e+00 : f32
    %12 = vector.broadcast %cst : f32 to vector<2x16xf32>
    %c0 = arith.constant 0 : index
    %c0_2 = arith.constant 0 : index
    %c0_3 = arith.constant 0 : index
    %13 = vector.load %arg2[%c0, %c0_2, %c0_3] : memref<2x8x16xf32, #tpu.memory_space<vmem>>, vector<2x8x16xf32>
    %14 = vector.shape_cast %11 : vector<8x1xf32> to vector<1x8x1xf32>
    %15 = vector.broadcast %14 : vector<1x8x1xf32> to vector<2x8x16xf32>
    %16 = arith.mulf %13, %15 : vector<2x8x16xf32>
    %cst_4 = arith.constant dense<0.000000e+00> : vector<2x16xf32>
    %17 = vector.multi_reduction <add>, %16, %cst_4 [1] : vector<2x8x16xf32> to vector<2x16xf32>
    %18 = arith.addf %12, %17 : vector<2x16xf32>
    %c0_5 = arith.constant 0 : index
    %c0_6 = arith.constant 0 : index
    %c0_7 = arith.constant 0 : index
    %19 = vector.load %arg3[%c0_5, %c0_6, %c0_7] : memref<2x8x16xf32, #tpu.memory_space<vmem>>, vector<2x8x16xf32>
    %20 = vector.shape_cast %11 : vector<8x1xf32> to vector<1x8x1xf32>
    %21 = vector.broadcast %20 : vector<1x8x1xf32> to vector<2x8x16xf32>
    %22 = arith.mulf %19, %21 : vector<2x8x16xf32>
    %cst_8 = arith.constant dense<0.000000e+00> : vector<2x16xf32>
    %23 = vector.multi_reduction <add>, %22, %cst_8 [1] : vector<2x8x16xf32> to vector<2x16xf32>
    %24 = arith.addf %18, %23 : vector<2x16xf32>
    %c0_9 = arith.constant 0 : index
    %c0_10 = arith.constant 0 : index
    %c0_11 = arith.constant 0 : index
    %25 = vector.load %arg4[%c0_9, %c0_10, %c0_11] : memref<2x8x16xf32, #tpu.memory_space<vmem>>, vector<2x8x16xf32>
    %26 = vector.shape_cast %11 : vector<8x1xf32> to vector<1x8x1xf32>
    %27 = vector.broadcast %26 : vector<1x8x1xf32> to vector<2x8x16xf32>
    %28 = arith.mulf %25, %27 : vector<2x8x16xf32>
    %cst_12 = arith.constant dense<0.000000e+00> : vector<2x16xf32>
    %29 = vector.multi_reduction <add>, %28, %cst_12 [1] : vector<2x8x16xf32> to vector<2x16xf32>
    %30 = arith.addf %24, %29 : vector<2x16xf32>
    %c0_13 = arith.constant 0 : index
    %c0_14 = arith.constant 0 : index
    %c0_15 = arith.constant 0 : index
    %31 = vector.load %arg5[%c0_13, %c0_14, %c0_15] : memref<2x8x16xf32, #tpu.memory_space<vmem>>, vector<2x8x16xf32>
    %32 = vector.shape_cast %11 : vector<8x1xf32> to vector<1x8x1xf32>
    %33 = vector.broadcast %32 : vector<1x8x1xf32> to vector<2x8x16xf32>
    %34 = arith.mulf %31, %33 : vector<2x8x16xf32>
    %cst_16 = arith.constant dense<0.000000e+00> : vector<2x16xf32>
    %35 = vector.multi_reduction <add>, %34, %cst_16 [1] : vector<2x8x16xf32> to vector<2x16xf32>
    %36 = arith.addf %30, %35 : vector<2x16xf32>
    %c0_17 = arith.constant 0 : index
    %c0_18 = arith.constant 0 : index
    %c0_19 = arith.constant 0 : index
    %37 = vector.load %arg6[%c0_17, %c0_18, %c0_19] : memref<2x8x16xf32, #tpu.memory_space<vmem>>, vector<2x8x16xf32>
    %38 = vector.shape_cast %11 : vector<8x1xf32> to vector<1x8x1xf32>
    %39 = vector.broadcast %38 : vector<1x8x1xf32> to vector<2x8x16xf32>
    %40 = arith.mulf %37, %39 : vector<2x8x16xf32>
    %cst_20 = arith.constant dense<0.000000e+00> : vector<2x16xf32>
    %41 = vector.multi_reduction <add>, %40, %cst_20 [1] : vector<2x8x16xf32> to vector<2x16xf32>
    %42 = arith.addf %36, %41 : vector<2x16xf32>
    %c0_21 = arith.constant 0 : index
    %c0_22 = arith.constant 0 : index
    %c0_23 = arith.constant 0 : index
    %43 = vector.load %arg7[%c0_21, %c0_22, %c0_23] : memref<2x8x16xf32, #tpu.memory_space<vmem>>, vector<2x8x16xf32>
    %44 = vector.shape_cast %11 : vector<8x1xf32> to vector<1x8x1xf32>
    %45 = vector.broadcast %44 : vector<1x8x1xf32> to vector<2x8x16xf32>
    %46 = arith.mulf %43, %45 : vector<2x8x16xf32>
    %cst_24 = arith.constant dense<0.000000e+00> : vector<2x16xf32>
    %47 = vector.multi_reduction <add>, %46, %cst_24 [1] : vector<2x8x16xf32> to vector<2x16xf32>
    %48 = arith.addf %42, %47 : vector<2x16xf32>
    %c0_25 = arith.constant 0 : index
    %c0_26 = arith.constant 0 : index
    %c0_27 = arith.constant 0 : index
    %49 = vector.load %arg8[%c0_25, %c0_26, %c0_27] : memref<2x8x16xf32, #tpu.memory_space<vmem>>, vector<2x8x16xf32>
    %50 = vector.shape_cast %11 : vector<8x1xf32> to vector<1x8x1xf32>
    %51 = vector.broadcast %50 : vector<1x8x1xf32> to vector<2x8x16xf32>
    %52 = arith.mulf %49, %51 : vector<2x8x16xf32>
    %cst_28 = arith.constant dense<0.000000e+00> : vector<2x16xf32>
    %53 = vector.multi_reduction <add>, %52, %cst_28 [1] : vector<2x8x16xf32> to vector<2x16xf32>
    %54 = arith.addf %48, %53 : vector<2x16xf32>
    %c0_29 = arith.constant 0 : index
    %c0_30 = arith.constant 0 : index
    %c0_31 = arith.constant 0 : index
    %55 = vector.load %arg9[%c0_29, %c0_30, %c0_31] : memref<2x8x16xf32, #tpu.memory_space<vmem>>, vector<2x8x16xf32>
    %56 = vector.shape_cast %11 : vector<8x1xf32> to vector<1x8x1xf32>
    %57 = vector.broadcast %56 : vector<1x8x1xf32> to vector<2x8x16xf32>
    %58 = arith.mulf %55, %57 : vector<2x8x16xf32>
    %cst_32 = arith.constant dense<0.000000e+00> : vector<2x16xf32>
    %59 = vector.multi_reduction <add>, %58, %cst_32 [1] : vector<2x8x16xf32> to vector<2x16xf32>
    %60 = arith.addf %54, %59 : vector<2x16xf32>
    %c0_33 = arith.constant 0 : index
    %c0_34 = arith.constant 0 : index
    %61 = vector.load %arg10[%c0_33, %c0_34] : memref<2x16xf32, #tpu.memory_space<vmem>>, vector<2x16xf32>
    %62 = arith.addf %61, %60 : vector<2x16xf32>
    %c0_35 = arith.constant 0 : index
    %c0_36 = arith.constant 0 : index
    %63 = vector.load %arg10[%c0_35, %c0_36] : memref<2x16xf32, #tpu.memory_space<vmem>>, vector<2x16xf32>
    tpu.vector_store %arg10[%c0_35, %c0_36], %62 {strides = array<i32>} : memref<2x16xf32, #tpu.memory_space<vmem>>, vector<2x16xf32>,
    return
  }
  func.func @transform_0(%arg0: i32, %arg1: i32) -> (i32, i32, i32) {
    %c1_i32 = arith.constant 1 : i32
    %0 = arith.addi %c1_i32, %arg1 : i32
    %c0_i32 = arith.constant 0 : i32
    %c0_i32_0 = arith.constant 0 : i32
    return %c0_i32, %0, %arg0 : i32, i32, i32
  }
  func.func @transform_1(%arg0: i32, %arg1: i32) -> (i32, i32, i32) {
    %c1_i32 = arith.constant 1 : i32
    %0 = arith.addi %c1_i32, %arg1 : i32
    %c0_i32 = arith.constant 0 : i32
    %c0_i32_0 = arith.constant 0 : i32
    return %c0_i32, %0, %arg0 : i32, i32, i32
  }
  func.func @transform_2(%arg0: i32, %arg1: i32) -> (i32, i32, i32) {
    %c1_i32 = arith.constant 1 : i32
    %0 = arith.addi %c1_i32, %arg1 : i32
    %c0_i32 = arith.constant 0 : i32
    %c0_i32_0 = arith.constant 0 : i32
    return %c0_i32, %0, %arg0 : i32, i32, i32
  }
  func.func @transform_3(%arg0: i32, %arg1: i32) -> (i32, i32, i32) {
    %c1_i32 = arith.constant 1 : i32
    %0 = arith.addi %c1_i32, %arg1 : i32
    %c0_i32 = arith.constant 0 : i32
    %c0_i32_0 = arith.constant 0 : i32
    return %c0_i32, %0, %arg0 : i32, i32, i32
  }
  func.func @transform_4(%arg0: i32, %arg1: i32) -> (i32, i32, i32) {
    %c1_i32 = arith.constant 1 : i32
    %0 = arith.addi %c1_i32, %arg1 : i32
    %c0_i32 = arith.constant 0 : i32
    %c0_i32_0 = arith.constant 0 : i32
    return %c0_i32, %0, %arg0 : i32, i32, i32
  }
  func.func @transform_5(%arg0: i32, %arg1: i32) -> (i32, i32, i32) {
    %c1_i32 = arith.constant 1 : i32
    %0 = arith.addi %c1_i32, %arg1 : i32
    %c0_i32 = arith.constant 0 : i32
    %c0_i32_0 = arith.constant 0 : i32
    return %c0_i32, %0, %arg0 : i32, i32, i32
  }
  func.func @transform_6(%arg0: i32, %arg1: i32) -> (i32, i32, i32) {
    %c1_i32 = arith.constant 1 : i32
    %0 = arith.addi %c1_i32, %arg1 : i32
    %c0_i32 = arith.constant 0 : i32
    %c0_i32_0 = arith.constant 0 : i32
    return %c0_i32, %0, %arg0 : i32, i32, i32
  }
  func.func @transform_7(%arg0: i32, %arg1: i32) -> (i32, i32, i32) {
    %c1_i32 = arith.constant 1 : i32
    %0 = arith.addi %c1_i32, %arg1 : i32
    %c0_i32 = arith.constant 0 : i32
    %c0_i32_0 = arith.constant 0 : i32
    return %c0_i32, %0, %arg0 : i32, i32, i32
  }
  func.func @transform_8(%arg0: i32, %arg1: i32) -> (i32, i32) {
    %c0_i32 = arith.constant 0 : i32
    %c0_i32_0 = arith.constant 0 : i32
    return %c0_i32, %arg0 : i32, i32
  }
}

</mosaic_0001>

<llo_original>
// kernel: tpu_custom_call.1
$region0: #{tpu_custom_call.1}
  #allocation0 [shape = 'u32[]', space=smem, size = 0x4, offset = 0x4, fixed_abs, tag = 'smem constant byte address 0x4 - core index']
  #allocation1 [shape = 'u32[72,128]{1,0:T(1,128)}', space=vmem, size = 0x9000, scoped, tag = 'internal scratch']
  %s0 = inlined_call_operand.hbm [shape: f32[2,16,16], index: 0, kind: input, shape index: {}]
  %s1 = inlined_call_operand.hbm [shape: f32[2,16,16], index: 1, kind: input, shape index: {}]
  %s2 = inlined_call_operand.hbm [shape: f32[2,16,16], index: 2, kind: input, shape index: {}]
  %s3 = inlined_call_operand.hbm [shape: f32[2,16,16], index: 3, kind: input, shape index: {}]
  %s4 = inlined_call_operand.hbm [shape: f32[2,16,16], index: 4, kind: input, shape index: {}]
  %s5 = inlined_call_operand.hbm [shape: f32[2,16,16], index: 5, kind: input, shape index: {}]
  %s6 = inlined_call_operand.hbm [shape: f32[2,16,16], index: 6, kind: input, shape index: {}]
  %s7 = inlined_call_operand.hbm [shape: f32[2,16,16], index: 7, kind: input, shape index: {}]
  %s8 = inlined_call_operand.hbm [shape: f32[2,16], index: 8, kind: output, shape index: {}]
  %s9 = sld [smem:[#allocation0]]
  $region78: #{tpu_custom_call.1} parent=0
    _
  %s11 = ssub.s32 1, %s9
  %s12 = scalar_select 0, %s11, %s9
  $region1: #{tpu_custom_call.1} parent=0
    #allocation2 [shape = 'u8[8192]{0}', space=vmem, size = 0x2000, scoped, tag = 'input window, operand 0, single buffered']
    #allocation3 [shape = 's32[1]{0}', space=sflag, size = 0x4, scoped, tag = 'scoped memory for tpu_custom_call.1']
    #allocation4 [shape = 's32[1]{0}', space=sflag, size = 0x4, scoped, tag = 'scoped memory for tpu_custom_call.1']
    #allocation5 [shape = 'u8[8192]{0}', space=vmem, size = 0x2000, scoped, tag = 'input window, operand 1, single buffered']
    #allocation6 [shape = 's32[1]{0}', space=sflag, size = 0x4, scoped, tag = 'scoped memory for tpu_custom_call.1']
    #allocation7 [shape = 'u8[8192]{0}', space=vmem, size = 0x2000, scoped, tag = 'input window, operand 2, single buffered']
    #allocation8 [shape = 'u8[8192]{0}', space=vmem, size = 0x2000, scoped, tag = 'input window, operand 3, single buffered']
    #allocation9 [shape = 's32[1]{0}', space=sflag, size = 0x4, scoped, tag = 'scoped memory for tpu_custom_call.1']
    #allocation10 [shape = 'u8[8192]{0}', space=vmem, size = 0x2000, scoped, tag = 'input window, operand 4, single buffered']
    #allocation11 [shape = 'u8[8192]{0}', space=vmem, size = 0x2000, scoped, tag = 'input window, operand 5, single buffered']
    #allocation12 [shape = 's32[1]{0}', space=sflag, size = 0x4, scoped, tag = 'scoped memory for tpu_custom_call.1']
    #allocation13 [shape = 'u8[8192]{0}', space=vmem, size = 0x2000, scoped, tag = 'input window, operand 6, single buffered']
    #allocation14 [shape = 'u8[8192]{0}', space=vmem, size = 0x2000, scoped, tag = 'input window, operand 7, single buffered']
    #allocation15 [shape = 's32[1]{0}', space=sflag, size = 0x4, scoped, tag = 'scoped memory for tpu_custom_call.1']
    #allocation16 [shape = 'u8[1024]{0}', space=vmem, size = 0x400, scoped, tag = 'output window, operand 0, single buffered']
    %13 = vsyncpa [#allocation3], 0
    %14 = vsyncpa [#allocation6], 0
    %15 = vsyncpa [#allocation9], 0
    %16 = vsyncpa [#allocation12], 0
    %17 = vsyncpa [#allocation15], 0
    %18 = vsyncpa [#allocation4], 0
    // Predicated region
    $region2: #{tpu_custom_call.1} parent=1 // pred_check
      _
    $region3: #{tpu_custom_call.1} parent=1 // pred_check_branch
      %20 = sbr.rel (0) target = $region5
    $region4: #{tpu_custom_call.1} parent=1 // pred_region
      %s21 = sadd.s32 0, 1
      %23 = vsyncadd [#allocation3], 0
      %s24 = smul.addr %s21, 8
      %s25 = scalar_lea.hbm %s0, %s24
      %s26 = sshll.u32 %s25, 4
      %s27 = int_to_ptr.hbm [resolvable:$true] %s26
      %s28 = sshll.u32 [#allocation2], 4
      %s29 = int_to_ptr.vmem [resolvable:$true] %s28
      %34 = dma.hbm_to_vmem [thread:$0]  %s27, 256, %s29, [#allocation3], 256, 128, 8
    $region5: #{tpu_custom_call.1} parent=1 // pred_fallthru
      _
    // Predicated region
    $region6: #{tpu_custom_call.1} parent=1 // pred_check
      _
    $region7: #{tpu_custom_call.1} parent=1 // pred_check_branch
      %36 = sbr.rel (0) target = $region9
    $region8: #{tpu_custom_call.1} parent=1 // pred_region
      %s37 = sadd.s32 0, 1
      %39 = vsyncadd [#allocation6], 0
      %s40 = smul.addr %s37, 8
      %s41 = scalar_lea.hbm %s1, %s40
      %s42 = sshll.u32 %s41, 4
      %s43 = int_to_ptr.hbm [resolvable:$true] %s42
      %s44 = sshll.u32 [#allocation5], 4
      %s45 = int_to_ptr.vmem [resolvable:$true] %s44
      %50 = dma.hbm_to_vmem [thread:$0]  %s43, 256, %s45, [#allocation6], 256, 128, 8
    $region9: #{tpu_custom_call.1} parent=1 // pred_fallthru
      _
    // Predicated region
    $region10: #{tpu_custom_call.1} parent=1 // pred_check
      _
    $region11: #{tpu_custom_call.1} parent=1 // pred_check_branch
      %52 = sbr.rel (0) target = $region13
    $region12: #{tpu_custom_call.1} parent=1 // pred_region
      %s53 = sadd.s32 0, 1
      %55 = vsyncadd [#allocation6], 0
      %s56 = smul.addr %s53, 8
      %s57 = scalar_lea.hbm %s2, %s56
      %s58 = sshll.u32 %s57, 4
      %s59 = int_to_ptr.hbm [resolvable:$true] %s58
      %s60 = sshll.u32 [#allocation7], 4
      %s61 = int_to_ptr.vmem [resolvable:$true] %s60
      %66 = dma.hbm_to_vmem [thread:$0]  %s59, 256, %s61, [#allocation6], 256, 128, 8
    $region13: #{tpu_custom_call.1} parent=1 // pred_fallthru
      _
    // Predicated region
    $region14: #{tpu_custom_call.1} parent=1 // pred_check
      _
    $region15: #{tpu_custom_call.1} parent=1 // pred_check_branch
      %68 = sbr.rel (0) target = $region17
    $region16: #{tpu_custom_call.1} parent=1 // pred_region
      %s69 = sadd.s32 0, 1
      %71 = vsyncadd [#allocation9], 0
      %s72 = smul.addr %s69, 8
      %s73 = scalar_lea.hbm %s3, %s72
      %s74 = sshll.u32 %s73, 4
      %s75 = int_to_ptr.hbm [resolvable:$true] %s74
      %s76 = sshll.u32 [#allocation8], 4
      %s77 = int_to_ptr.vmem [resolvable:$true] %s76
      %82 = dma.hbm_to_vmem [thread:$0]  %s75, 256, %s77, [#allocation9], 256, 128, 8
    $region17: #{tpu_custom_call.1} parent=1 // pred_fallthru
      _
    // Predicated region
    $region18: #{tpu_custom_call.1} parent=1 // pred_check
      _
    $region19: #{tpu_custom_call.1} parent=1 // pred_check_branch
      %84 = sbr.rel (0) target = $region21
    $region20: #{tpu_custom_call.1} parent=1 // pred_region
      %s85 = sadd.s32 0, 1
      %87 = vsyncadd [#allocation9], 0
      %s88 = smul.addr %s85, 8
      %s89 = scalar_lea.hbm %s4, %s88
      %s90 = sshll.u32 %s89, 4
      %s91 = int_to_ptr.hbm [resolvable:$true] %s90
      %s92 = sshll.u32 [#allocation10], 4
      %s93 = int_to_ptr.vmem [resolvable:$true] %s92
      %98 = dma.hbm_to_vmem [thread:$0]  %s91, 256, %s93, [#allocation9], 256, 128, 8
    $region21: #{tpu_custom_call.1} parent=1 // pred_fallthru
      _
    // Predicated region
    $region22: #{tpu_custom_call.1} parent=1 // pred_check
      _
    $region23: #{tpu_custom_call.1} parent=1 // pred_check_branch
      %100 = sbr.rel (0) target = $region25
    $region24: #{tpu_custom_call.1} parent=1 // pred_region
      %s101 = sadd.s32 0, 1
      %103 = vsyncadd [#allocation12], 0
      %s104 = smul.addr %s101, 8
      %s105 = scalar_lea.hbm %s5, %s104
      %s106 = sshll.u32 %s105, 4
      %s107 = int_to_ptr.hbm [resolvable:$true] %s106
      %s108 = sshll.u32 [#allocation11], 4
      %s109 = int_to_ptr.vmem [resolvable:$true] %s108
      %114 = dma.hbm_to_vmem [thread:$0]  %s107, 256, %s109, [#allocation12], 256, 128, 8
    $region25: #{tpu_custom_call.1} parent=1 // pred_fallthru
      _
    // Predicated region
    $region26: #{tpu_custom_call.1} parent=1 // pred_check
      _
    $region27: #{tpu_custom_call.1} parent=1 // pred_check_branch
      %116 = sbr.rel (0) target = $region29
    $region28: #{tpu_custom_call.1} parent=1 // pred_region
      %s117 = sadd.s32 0, 1
      %119 = vsyncadd [#allocation12], 0
      %s120 = smul.addr %s117, 8
      %s121 = scalar_lea.hbm %s6, %s120
      %s122 = sshll.u32 %s121, 4
      %s123 = int_to_ptr.hbm [resolvable:$true] %s122
      %s124 = sshll.u32 [#allocation13], 4
      %s125 = int_to_ptr.vmem [resolvable:$true] %s124
      %130 = dma.hbm_to_vmem [thread:$0]  %s123, 256, %s125, [#allocation12], 256, 128, 8
    $region29: #{tpu_custom_call.1} parent=1 // pred_fallthru
      _
    // Predicated region
    $region30: #{tpu_custom_call.1} parent=1 // pred_check
      _
    $region31: #{tpu_custom_call.1} parent=1 // pred_check_branch
      %132 = sbr.rel (0) target = $region33
    $region32: #{tpu_custom_call.1} parent=1 // pred_region
      %s133 = sadd.s32 0, 1
      %135 = vsyncadd [#allocation15], 0
      %s136 = smul.addr %s133, 8
      %s137 = scalar_lea.hbm %s7, %s136
      %s138 = sshll.u32 %s137, 4
      %s139 = int_to_ptr.hbm [resolvable:$true] %s138
      %s140 = sshll.u32 [#allocation14], 4
      %s141 = int_to_ptr.vmem [resolvable:$true] %s140
      %146 = dma.hbm_to_vmem [thread:$0]  %s139, 256, %s141, [#allocation15], 256, 128, 8
    $region33: #{tpu_custom_call.1} parent=1 // pred_fallthru
      _
    // Predicated region
    $region34: #{tpu_custom_call.1} parent=1 // pred_check
      _
    $region35: #{tpu_custom_call.1} parent=1 // pred_check_branch
      %148 = sbr.rel (0) target = $region37
    $region36: #{tpu_custom_call.1} parent=1 // pred_region
      %150 = dma.done [#allocation3], 256
    $region37: #{tpu_custom_call.1} parent=1 // pred_fallthru
      _
    // Predicated region
    $region38: #{tpu_custom_call.1} parent=1 // pred_check
      _
    $region39: #{tpu_custom_call.1} parent=1 // pred_check_branch
      %152 = sbr.rel (0) target = $region41
    $region40: #{tpu_custom_call.1} parent=1 // pred_region
      %154 = dma.done [#allocation6], 256
    $region41: #{tpu_custom_call.1} parent=1 // pred_fallthru
      _
    // Predicated region
    $region42: #{tpu_custom_call.1} parent=1 // pred_check
      _
    $region43: #{tpu_custom_call.1} parent=1 // pred_check_branch
      %156 = sbr.rel (0) target = $region45
    $region44: #{tpu_custom_call.1} parent=1 // pred_region
      %158 = dma.done [#allocation6], 256
    $region45: #{tpu_custom_call.1} parent=1 // pred_fallthru
      _
    // Predicated region
    $region46: #{tpu_custom_call.1} parent=1 // pred_check
      _
    $region47: #{tpu_custom_call.1} parent=1 // pred_check_branch
      %160 = sbr.rel (0) target = $region49
    $region48: #{tpu_custom_call.1} parent=1 // pred_region
      %162 = dma.done [#allocation9], 256
    $region49: #{tpu_custom_call.1} parent=1 // pred_fallthru
      _
    // Predicated region
    $region50: #{tpu_custom_call.1} parent=1 // pred_check
      _
    $region51: #{tpu_custom_call.1} parent=1 // pred_check_branch
      %164 = sbr.rel (0) target = $region53
    $region52: #{tpu_custom_call.1} parent=1 // pred_region
      %166 = dma.done [#allocation9], 256
    $region53: #{tpu_custom_call.1} parent=1 // pred_fallthru
      _
    // Predicated region
    $region54: #{tpu_custom_call.1} parent=1 // pred_check
      _
    $region55: #{tpu_custom_call.1} parent=1 // pred_check_branch
      %168 = sbr.rel (0) target = $region57
    $region56: #{tpu_custom_call.1} parent=1 // pred_region
      %170 = dma.done [#allocation12], 256
    $region57: #{tpu_custom_call.1} parent=1 // pred_fallthru
      _
    // Predicated region
    $region58: #{tpu_custom_call.1} parent=1 // pred_check
      _
    $region59: #{tpu_custom_call.1} parent=1 // pred_check_branch
      %172 = sbr.rel (0) target = $region61
    $region60: #{tpu_custom_call.1} parent=1 // pred_region
      %174 = dma.done [#allocation12], 256
    $region61: #{tpu_custom_call.1} parent=1 // pred_fallthru
      _
    // Predicated region
    $region62: #{tpu_custom_call.1} parent=1 // pred_check
      _
    $region63: #{tpu_custom_call.1} parent=1 // pred_check_branch
      %176 = sbr.rel (0) target = $region65
    $region64: #{tpu_custom_call.1} parent=1 // pred_region
      %178 = dma.done [#allocation15], 256
    $region65: #{tpu_custom_call.1} parent=1 // pred_fallthru
      _
    %s179 = sadd.s32 0, 1
    %s180 = sadd.s32 0, 1
    %s181 = sadd.s32 0, 1
    %s182 = sadd.s32 0, 1
    %s183 = sadd.s32 0, 1
    %s184 = sadd.s32 0, 1
    %s185 = sadd.s32 0, 1
    %s186 = sadd.s32 0, 1
    %p187 = scmp.eq.s32.totalorder 0, 0
    // Predicated region
    $region66: #{tpu_custom_call.1} parent=1 // pred_check
      %p188 = pneg %p187
    $region67: #{tpu_custom_call.1} parent=1 // pred_check_branch
      %190 = sbr.rel (%p188) target = $region69
    $region68: #{tpu_custom_call.1} parent=1 // pred_region
      %vm191 = vcmask 123904
      %192 = vst.msk [vmem:[#allocation16] sm:$0x3] %vm191, 0.0
    $region69: #{tpu_custom_call.1} parent=1 // pred_fallthru
      _
    %s193 = sadd.s32 0, 1
    %s194 = smul.u32 %s193, 8
    %v195 = vlaneseq
    %v196 = vshrl.u32 %v195, 7
    %v197 = vstv %s194
    %v198 = vadd.s32 %v196, %v197
    %vm199 = vcmp.ge.s32.totalorder %v198, 8
    %v200 = vsel %vm199, 1, 0
    %v201 = vcvt.s32.f32 %v200
    %v202 = vld [vmem:[#allocation2] sm:$0xff]
    %v203 = vld [vmem:[#allocation2 + $0x8] sm:$0xff]
    %v204 = vmul.f32 %v202, %v201
    %v205 = vmul.f32 %v203, %v201
    %vm206 = vcmask 130048
    %v207 = vsel %vm206, %v204, 0.0
    %v208 = vrot.slane %v207, 4
    %v209 = vadd.f32 %v207, %v208
    %v210 = vrot.slane %v209, 2
    %v211 = vadd.f32 %v209, %v210
    %v212 = vrot.slane %v211, 1
    %v213 = vadd.f32 %v211, %v212
    %v214 = vsel %vm206, %v205, 0.0
    %v215 = vrot.slane %v214, 4
    %v216 = vadd.f32 %v214, %v215
    %v217 = vrot.slane %v216, 2
    %v218 = vadd.f32 %v216, %v217
    %v219 = vrot.slane %v218, 1
    %v220 = vadd.f32 %v218, %v219
    %v221 = vadd.f32 %v213, 0.0
    %v222 = vadd.f32 %v220, 0.0
    %v223 = vld [vmem:[#allocation5] sm:$0xff]
    %v224 = vld [vmem:[#allocation5 + $0x8] sm:$0xff]
    %v225 = vmul.f32 %v223, %v201
    %v226 = vmul.f32 %v224, %v201
    %v227 = vsel %vm206, %v225, 0.0
    %v228 = vrot.slane %v227, 4
    %v229 = vadd.f32 %v227, %v228
    %v230 = vrot.slane %v229, 2
    %v231 = vadd.f32 %v229, %v230
    %v232 = vrot.slane %v231, 1
    %v233 = vadd.f32 %v231, %v232
    %v234 = vsel %vm206, %v226, 0.0
    %v235 = vrot.slane %v234, 4
    %v236 = vadd.f32 %v234, %v235
    %v237 = vrot.slane %v236, 2
    %v238 = vadd.f32 %v236, %v237
    %v239 = vrot.slane %v238, 1
    %v240 = vadd.f32 %v238, %v239
    %v241 = vadd.f32 %v221, %v233
    %v242 = vadd.f32 %v222, %v240
    %v243 = vld [vmem:[#allocation7] sm:$0xff]
    %v244 = vld [vmem:[#allocation7 + $0x8] sm:$0xff]
    %v245 = vmul.f32 %v243, %v201
    %v246 = vmul.f32 %v244, %v201
    %v247 = vsel %vm206, %v245, 0.0
    %v248 = vrot.slane %v247, 4
    %v249 = vadd.f32 %v247, %v248
    %v250 = vrot.slane %v249, 2
    %v251 = vadd.f32 %v249, %v250
    %v252 = vrot.slane %v251, 1
    %v253 = vadd.f32 %v251, %v252
    %v254 = vsel %vm206, %v246, 0.0
    %v255 = vrot.slane %v254, 4
    %v256 = vadd.f32 %v254, %v255
    %v257 = vrot.slane %v256, 2
    %v258 = vadd.f32 %v256, %v257
    %v259 = vrot.slane %v258, 1
    %v260 = vadd.f32 %v258, %v259
    %v261 = vadd.f32 %v241, %v253
    %v262 = vadd.f32 %v242, %v260
    %v263 = vld [vmem:[#allocation8] sm:$0xff]
    %v264 = vld [vmem:[#allocation8 + $0x8] sm:$0xff]
    %v265 = vmul.f32 %v263, %v201
    %v266 = vmul.f32 %v264, %v201
    %v267 = vsel %vm206, %v265, 0.0
    %v268 = vrot.slane %v267, 4
    %v269 = vadd.f32 %v267, %v268
    %v270 = vrot.slane %v269, 2
    %v271 = vadd.f32 %v269, %v270
    %v272 = vrot.slane %v271, 1
    %v273 = vadd.f32 %v271, %v272
    %v274 = vsel %vm206, %v266, 0.0
    %v275 = vrot.slane %v274, 4
    %v276 = vadd.f32 %v274, %v275
    %v277 = vrot.slane %v276, 2
    %v278 = vadd.f32 %v276, %v277
    %v279 = vrot.slane %v278, 1
    %v280 = vadd.f32 %v278, %v279
    %v281 = vadd.f32 %v261, %v273
    %v282 = vadd.f32 %v262, %v280
    %v283 = vld [vmem:[#allocation10] sm:$0xff]
    %v284 = vld [vmem:[#allocation10 + $0x8] sm:$0xff]
    %v285 = vmul.f32 %v283, %v201
    %v286 = vmul.f32 %v284, %v201
    %v287 = vsel %vm206, %v285, 0.0
    %v288 = vrot.slane %v287, 4
    %v289 = vadd.f32 %v287, %v288
    %v290 = vrot.slane %v289, 2
    %v291 = vadd.f32 %v289, %v290
    %v292 = vrot.slane %v291, 1
    %v293 = vadd.f32 %v291, %v292
    %v294 = vsel %vm206, %v286, 0.0
    %v295 = vrot.slane %v294, 4
    %v296 = vadd.f32 %v294, %v295
    %v297 = vrot.slane %v296, 2
    %v298 = vadd.f32 %v296, %v297
    %v299 = vrot.slane %v298, 1
    %v300 = vadd.f32 %v298, %v299
    %v301 = vadd.f32 %v281, %v293
    %v302 = vadd.f32 %v282, %v300
    %v303 = vld [vmem:[#allocation11] sm:$0xff]
    %v304 = vld [vmem:[#allocation11 + $0x8] sm:$0xff]
    %v305 = vmul.f32 %v303, %v201
    %v306 = vmul.f32 %v304, %v201
    %v307 = vsel %vm206, %v305, 0.0
    %v308 = vrot.slane %v307, 4
    %v309 = vadd.f32 %v307, %v308
    %v310 = vrot.slane %v309, 2
    %v311 = vadd.f32 %v309, %v310
    %v312 = vrot.slane %v311, 1
    %v313 = vadd.f32 %v311, %v312
    %v314 = vsel %vm206, %v306, 0.0
    %v315 = vrot.slane %v314, 4
    %v316 = vadd.f32 %v314, %v315
    %v317 = vrot.slane %v316, 2
    %v318 = vadd.f32 %v316, %v317
    %v319 = vrot.slane %v318, 1
    %v320 = vadd.f32 %v318, %v319
    %v321 = vadd.f32 %v301, %v313
    %v322 = vadd.f32 %v302, %v320
    %v323 = vld [vmem:[#allocation13] sm:$0xff]
    %v324 = vld [vmem:[#allocation13 + $0x8] sm:$0xff]
    %v325 = vmul.f32 %v323, %v201
    %v326 = vmul.f32 %v324, %v201
    %v327 = vsel %vm206, %v325, 0.0
    %v328 = vrot.slane %v327, 4
    %v329 = vadd.f32 %v327, %v328
    %v330 = vrot.slane %v329, 2
    %v331 = vadd.f32 %v329, %v330
    %v332 = vrot.slane %v331, 1
    %v333 = vadd.f32 %v331, %v332
    %v334 = vsel %vm206, %v326, 0.0
    %v335 = vrot.slane %v334, 4
    %v336 = vadd.f32 %v334, %v335
    %v337 = vrot.slane %v336, 2
    %v338 = vadd.f32 %v336, %v337
    %v339 = vrot.slane %v338, 1
    %v340 = vadd.f32 %v338, %v339
    %v341 = vadd.f32 %v321, %v333
    %v342 = vadd.f32 %v322, %v340
    %v343 = vld [vmem:[#allocation14] sm:$0xff]
    %v344 = vld [vmem:[#allocation14 + $0x8] sm:$0xff]
    %v345 = vmul.f32 %v343, %v201
    %v346 = vmul.f32 %v344, %v201
    %v347 = vsel %vm206, %v345, 0.0
    %v348 = vrot.slane %v347, 4
    %v349 = vadd.f32 %v347, %v348
    %v350 = vrot.slane %v349, 2
    %v351 = vadd.f32 %v349, %v350
    %v352 = vrot.slane %v351, 1
    %v353 = vadd.f32 %v351, %v352
    %v354 = vsel %vm206, %v346, 0.0
    %v355 = vrot.slane %v354, 4
    %v356 = vadd.f32 %v354, %v355
    %v357 = vrot.slane %v356, 2
    %v358 = vadd.f32 %v356, %v357
    %v359 = vrot.slane %v358, 1
    %v360 = vadd.f32 %v358, %v359
    %v361 = vadd.f32 %v341, %v353
    %v362 = vadd.f32 %v342, %v360
    %v363 = vld [vmem:[#allocation16] sm:$0x3]
    %vm366 = vcmask 1041409
    %v367 = vsel %vm366, %v362, %v361
    %v369 = vadd.f32 %v363, %v367
    %vm370 = vcmask 123904
    %371 = vst.msk [vmem:[#allocation16] sm:$0x3] %vm370, %v369
    // Predicated region
    $region70: #{tpu_custom_call.1} parent=1 // pred_check
      _
    $region71: #{tpu_custom_call.1} parent=1 // pred_check_branch
      %373 = sbr.rel (0) target = $region73
    $region72: #{tpu_custom_call.1} parent=1 // pred_region
      %375 = vsyncadd [#allocation4], 0
      %s377 = sshll.u32 [#allocation16], 4
      %s378 = int_to_ptr.vmem [resolvable:$true] %s377
      %s379 = sshll.u32 %s8, 4
      %s380 = int_to_ptr.hbm [resolvable:$true] %s379
      %382 = dma.vmem_to_hbm [thread:$0]  %s378, 32, %s380, [#allocation4]
    $region73: #{tpu_custom_call.1} parent=1 // pred_fallthru
      _
    // Predicated region
    $region74: #{tpu_custom_call.1} parent=1 // pred_check
      _
    $region75: #{tpu_custom_call.1} parent=1 // pred_check_branch
      %384 = sbr.rel (0) target = $region77
    $region76: #{tpu_custom_call.1} parent=1 // pred_region
      %386 = dma.done [#allocation4], 32
    $region77: #{tpu_custom_call.1} parent=1 // pred_fallthru
      _
    %387 = vsyncpa [#allocation3], 1
    %388 = vsyncpa [#allocation6], 1
    %389 = vsyncpa [#allocation9], 1
    %390 = vsyncpa [#allocation12], 1
    %391 = vsyncpa [#allocation15], 1
    %392 = vsyncpa [#allocation4], 1

</llo_original>
